<compile_context>
chip_gen: v6e
topology: v6e:2x2x1
jax: 0.10.0
libtpu: 0.0.40
codegen_flags: <defaults>
</compile_context>

<pallas_src>
import functools

import jax
import jax.numpy as jnp
from jax.experimental import pallas as pl
from jax.experimental.pallas import tpu as pltpu

_INV_SQRT2 = 0.7071067811865476


def _gelu_exact(x):
    # nn.GELU() default (approximate='none'): 0.5 * x * (1 + erf(x / sqrt(2))).
    return 0.5 * x * (1.0 + jax.lax.erf(x * _INV_SQRT2))


def _convblock_kernel(x_ref, band1_ref, bias1_ref, band2_ref, bias2_ref, mask_ref,
                      out_ref, *, Bt, H, Hp, W, Cout, pool):
    """One group of Bt samples per grid step.

    x_ref:     (Bt*Hp, W*Cin) bf16   H-zero-padded samples stacked on rows
    band1_ref: (3, W*Cin, W*Cout) bf16   banded conv1 weights (BN1 scale folded in)
    bias1_ref: (1, W*Cout) f32           folded BN1 bias, tiled over W
    band2_ref: (3, W*Cout, W*Cout) bf16  banded conv2 weights (BN2 scale folded in;
                                         output columns pre-permuted when pooling)
    bias2_ref: (1, W*Cout) f32
    mask_ref:  (Bt*Hp-2, 1) f32          1 on real image rows, 0 on padding rows
    out_ref:   (Ho, Bt*Wo*Cout) f32 (pool) or (Bt*H, W*Cout) f32
    """
    Mo = Bt * Hp - 2                      # rows computed = padded positions 1..Bt*Hp-2
    Wc = W * Cout

    # --- conv1 (+ folded BN1): three banded bf16 MXU matmuls over shifted row
    # windows of the flattened input block; f32 accumulation. ---
    acc = jnp.dot(x_ref[0:Mo, :], band1_ref[0], preferred_element_type=jnp.float32)
    acc += jnp.dot(x_ref[1:Mo + 1, :], band1_ref[1], preferred_element_type=jnp.float32)
    acc += jnp.dot(x_ref[2:Mo + 2, :], band1_ref[2], preferred_element_type=jnp.float32)

    # GELU, then zero the per-sample padding rows so conv2 sees the same
    # zero-padded row structure; cast once to bf16 for the second MXU pass.
    y1 = _gelu_exact(acc + bias1_ref[...]) * mask_ref[...]        # (Mo, Wc) f32
    zrow = jnp.zeros((1, Wc), jnp.float32)
    a1 = y1.astype(jnp.bfloat16)                                   # rows r
    a0 = jnp.concatenate([zrow, y1[:-1, :]], axis=0).astype(jnp.bfloat16)  # rows r-1
    a2 = jnp.concatenate([y1[1:, :], zrow], axis=0).astype(jnp.bfloat16)   # rows r+1

    # --- conv2 (+ folded BN2) ---
    acc2 = jnp.dot(a0, band2_ref[0], preferred_element_type=jnp.float32)
    acc2 += jnp.dot(a1, band2_ref[1], preferred_element_type=jnp.float32)
    acc2 += jnp.dot(a2, band2_ref[2], preferred_element_type=jnp.float32)
    y2 = _gelu_exact(acc2 + bias2_ref[...])                        # (Mo, Wc) f32

    # Sample b's real rows sit at value rows [b*Hp, b*Hp + H) (sublane-aligned).
    if pool:
        half = (W // 2) * Cout
        parts = []
        for b in range(Bt):
            blk = y2[b * Hp:b * Hp + H, :]                         # (H, Wc)
            # band2's output columns are ordered [even w | odd w] -> W pooling is a
            # plain max of the two lane halves; H pooling reduces row pairs.
            mw = jnp.maximum(blk[:, :half], blk[:, half:])         # (H, Wo*Cout)
            parts.append(jnp.max(mw.reshape(H // 2, 2, half), axis=1))
        # Pack the Bt pooled results side-by-side on lanes -> one full-width store.
        out_ref[...] = jnp.concatenate(parts, axis=-1).astype(out_ref.dtype)
    else:
        parts = [y2[b * Hp:b * Hp + H, :] for b in range(Bt)]
        out_ref[...] = jnp.concatenate(parts, axis=0).astype(out_ref.dtype)


def _band_matrices(w_eff, W, out_cols):
    """Build (3, W*Cin, W*Cout) banded matrices for a 3x3 'same' conv.

    Band[dy] maps the flattened (W, Cin) input row to the flattened (W, Cout)
    output row for kernel row dy (W zero-padding handled by the band structure).
    out_cols[j] = wo*Cout + co gives output (position, channel) of column j,
    allowing an arbitrary output-column permutation (used for pooling).
    """
    Cout, Cin = w_eff.shape[0], w_eff.shape[1]
    K = W * Cin
    wi = jnp.arange(K) // Cin                 # input spatial position of each row
    ci = jnp.arange(K) % Cin                  # input channel of each row
    wo = out_cols // Cout                     # output spatial position per column
    co = out_cols % Cout                      # output channel per column
    dx = wi[:, None] - wo[None, :] + 1        # kernel column index, (K, W*Cout)
    valid = (dx >= 0) & (dx <= 2)
    dxc = jnp.clip(dx, 0, 2)
    bands = []
    for dy in range(3):
        v = w_eff[co[None, :], ci[:, None], dy, dxc]       # (K, W*Cout)
        bands.append(jnp.where(valid, v, 0.0))
    return jnp.stack(bands, axis=0)


def _pooled_out_cols(W, Cout):
    # New column j -> standard column (2*wo + r)*Cout + c: even-w block first,
    # odd-w block second, so 2x2 pooling over W is a lane-halves max.
    Wo = W // 2
    j = jnp.arange(W * Cout)
    r = j // (Wo * Cout)
    wo = (j % (Wo * Cout)) // Cout
    c = j % Cout
    return (2 * wo + r) * Cout + c


def _round_up(x, m):
    return (x + m - 1) // m * m


def _pick_bt(n, hp, target_rows=256):
    # Largest divisor of n whose row block Bt*Hp stays near one MXU pass (~256 rows).
    cap = max(1, target_rows // hp)
    bt = 1
    for d in range(1, min(n, cap) + 1):
        if n % d == 0:
            bt = d
    return bt


def conv_block_forward(x_nchw, params, *, pool=True, eps=1e-5):
    """ConvBlock forward (eval-mode BatchNorm). Input (N, Cin, H, W), output NCHW."""
    N, Cin, H, W = x_nchw.shape
    Cout = params["w1"].shape[0]
    if pool:
        assert H % 2 == 0 and W % 2 == 0

    Hp = _round_up(H + 2, 8)          # per-sample padded rows (sublane-aligned)
    Bt = _pick_bt(N, Hp)              # samples per grid step (M-batching)
    G = N // Bt
    K = W * Cin
    Wc = W * Cout
    Ho, Wo = (H // 2, W // 2) if pool else (H, W)

    # NCHW -> flattened (N*Hp, W*Cin) bf16: channels-minor lane layout, H zero-
    # padded per sample (W zero-padding lives in the band matrices).  The bf16
    # cast fuses into this single XLA pass over x.
    xh = jnp.transpose(x_nchw.astype(jnp.float32), (0, 2, 3, 1))
    xh = jnp.pad(xh, ((0, 0), (1, Hp - 1 - H), (0, 0), (0, 0)))
    xflat = xh.reshape(N * Hp, K).astype(jnp.bfloat16)

    def fold_bn(w, b, g, beta, m, v):
        s = g / jnp.sqrt(v + eps)
        return w * s[:, None, None, None], (b - m) * s + beta

    w1e, bias1 = fold_bn(params["w1"], params["b1"], params["g1"],
                         params["beta1"], params["m1"], params["v1"])
    w2e, bias2 = fold_bn(params["w2"], params["b2"], params["g2"],
                         params["beta2"], params["m2"], params["v2"])

    ident = jnp.arange(Wc)
    cols2 = _pooled_out_cols(W, Cout) if pool else ident
    band1 = _band_matrices(w1e, W, ident).astype(jnp.bfloat16)   # (3, W*Cin,  W*Cout)
    band2 = _band_matrices(w2e, W, cols2).astype(jnp.bfloat16)   # (3, W*Cout, W*Cout)
    b1row = jnp.tile(bias1, W).reshape(1, Wc).astype(jnp.float32)
    b2row = jnp.tile(bias2, W).reshape(1, Wc).astype(jnp.float32)

    # Row mask: 1 on real image rows, 0 on per-sample padding rows (padded
    # position of computed row v is v+1).
    Mo = Bt * Hp - 2
    pos = (jnp.arange(Mo) + 1) % Hp
    mask = ((pos >= 1) & (pos <= H)).astype(jnp.float32).reshape(Mo, 1)

    if pool:
        out_shape = jax.ShapeDtypeStruct((G * Ho, Bt * Wo * Cout), jnp.float32)
        out_spec = pl.BlockSpec((Ho, Bt * Wo * Cout), lambda g: (g, 0))
    else:
        out_shape = jax.ShapeDtypeStruct((N * H, Wc), jnp.float32)
        out_spec = pl.BlockSpec((Bt * H, Wc), lambda g: (g, 0))

    kernel = functools.partial(_convblock_kernel, Bt=Bt, H=H, Hp=Hp, W=W,
                               Cout=Cout, pool=pool)
    out = pl.pallas_call(
        kernel,
        out_shape=out_shape,
        grid=(G,),
        in_specs=[
            pl.BlockSpec((Bt * Hp, K), lambda g: (g, 0)),          # x (bf16)
            pl.BlockSpec((3, K, Wc), lambda g: (0, 0, 0)),         # band1 (resident)
            pl.BlockSpec((1, Wc), lambda g: (0, 0)),               # bias1
            pl.BlockSpec((3, Wc, Wc), lambda g: (0, 0, 0)),        # band2 (resident)
            pl.BlockSpec((1, Wc), lambda g: (0, 0)),               # bias2
            pl.BlockSpec((Mo, 1), lambda g: (0, 0)),               # row mask
        ],
        out_specs=out_spec,
        compiler_params=pltpu.CompilerParams(
            dimension_semantics=("parallel",),       # batch-group axis -> both TCs
            vmem_limit_bytes=32 * 1024 * 1024),      # actual per-step use << 1 MiB
    )(xflat, band1, b1row, band2, b2row, mask)

    if pool:
        out = out.reshape(G, Ho, Bt, Wo, Cout)
        out = jnp.transpose(out, (0, 2, 4, 1, 3)).reshape(N, Cout, Ho, Wo)
    else:
        out = out.reshape(N, H, W, Cout)
        out = jnp.transpose(out, (0, 3, 1, 2))
    return out


def _reference_forward(x, params, *, pool=True, eps=1e-5):
    # Pure-JAX reference (NCHW, eval-mode BN, exact GELU) for a sanity check.
    def conv(x, w, b):
        y = jax.lax.conv_general_dilated(
            x, w, window_strides=(1, 1), padding="SAME",
            dimension_numbers=("NCHW", "OIHW", "NCHW"),
            precision=jax.lax.Precision.HIGHEST)
        return y + b[None, :, None, None]

    def bn(x, g, bt, m, v):
        return (x - m[None, :, None, None]) * (
            g[None, :, None, None] / jnp.sqrt(v[None, :, None, None] + eps)
        ) + bt[None, :, None, None]

    y = conv(x, params["w1"], params["b1"])
    y = bn(y, params["g1"], params["beta1"], params["m1"], params["v1"])
    y = jax.nn.gelu(y, approximate=False)
    y = conv(y, params["w2"], params["b2"])
    y = bn(y, params["g2"], params["beta2"], params["m2"], params["v2"])
    y = jax.nn.gelu(y, approximate=False)
    if pool:
        y = jax.lax.reduce_window(y, -jnp.inf, jax.lax.max,
                                  (1, 1, 2, 2), (1, 1, 2, 2), "VALID")
    return y


if __name__ == "__main__":
    N, Cin, Cout, H, W = 2, 4, 8, 16, 16

    key = jax.random.PRNGKey(0)
    ks = jax.random.split(key, 9)
    params = {
        "w1": 0.1 * jax.random.normal(ks[0], (Cout, Cin, 3, 3), jnp.float32),
        "b1": 0.1 * jax.random.normal(ks[1], (Cout,), jnp.float32),
        "g1": 1.0 + 0.1 * jax.random.normal(ks[2], (Cout,), jnp.float32),
        "beta1": 0.1 * jax.random.normal(ks[3], (Cout,), jnp.float32),
        "m1": jnp.zeros((Cout,), jnp.float32),   # BatchNorm running_mean (fresh init)
        "v1": jnp.ones((Cout,), jnp.float32),    # BatchNorm running_var  (fresh init)
        "w2": 0.1 * jax.random.normal(ks[4], (Cout, Cout, 3, 3), jnp.float32),
        "b2": 0.1 * jax.random.normal(ks[5], (Cout,), jnp.float32),
        "g2": 1.0 + 0.1 * jax.random.normal(ks[6], (Cout,), jnp.float32),
        "beta2": 0.1 * jax.random.normal(ks[7], (Cout,), jnp.float32),
        "m2": jnp.zeros((Cout,), jnp.float32),
        "v2": jnp.ones((Cout,), jnp.float32),
    }
    x = jax.random.normal(ks[8], (N, Cin, H, W), jnp.float32)

    fwd_pool = jax.jit(functools.partial(conv_block_forward, pool=True))
    fwd_nopool = jax.jit(functools.partial(conv_block_forward, pool=False))

    out = jax.block_until_ready(fwd_pool(x, params))
    assert out.shape == (N, Cout, H // 2, W // 2), out.shape
    ref = _reference_forward(x, params, pool=True)
    err = float(jnp.max(jnp.abs(out - ref)))
    # bf16 MXU operands (f32 accumulation) vs HIGHEST-precision f32 reference.
    assert err < 3e-2, f"pool=True max abs error vs reference: {err}"

    out2 = jax.block_until_ready(fwd_nopool(x, params))
    assert out2.shape == (N, Cout, H, W), out2.shape
    ref2 = _reference_forward(x, params, pool=False)
    err2 = float(jnp.max(jnp.abs(out2 - ref2)))
    assert err2 < 3e-2, f"pool=False max abs error vs reference: {err2}"

    print("KERNEL_OK")
</pallas_src>

<mosaic_0001>
module attributes {stable_mosaic.version = 11 : i64} {
  func.func @_convblock_kernel(%arg0: i32, %arg1: memref<48x64xbf16, #tpu.memory_space<vmem>>, %arg2: memref<3x64x128xbf16, #tpu.memory_space<vmem>>, %arg3: memref<1x128xf32, #tpu.memory_space<vmem>>, %arg4: memref<3x128x128xbf16, #tpu.memory_space<vmem>>, %arg5: memref<1x128xf32, #tpu.memory_space<vmem>>, %arg6: memref<46x1xf32, #tpu.memory_space<vmem>>, %arg7: memref<8x128xf32, #tpu.memory_space<vmem>>) attributes {dimension_semantics = [#tpu.dimension_semantics<parallel>], iteration_bounds = array<i64: 1>, scalar_prefetch = 0 : i64, scratch_operands = 0 : i64, tpu.core_type = #tpu.core_type<tc>, window_params = [{transform_indices = @transform_0, window_bounds = array<i64: 48, 64>}, {pipeline_mode = #tpu.pipeline_mode<synchronous>, transform_indices = @transform_1, window_bounds = array<i64: 3, 64, 128>}, {pipeline_mode = #tpu.pipeline_mode<synchronous>, transform_indices = @transform_2, window_bounds = array<i64: 1, 128>}, {pipeline_mode = #tpu.pipeline_mode<synchronous>, transform_indices = @transform_3, window_bounds = array<i64: 3, 128, 128>}, {pipeline_mode = #tpu.pipeline_mode<synchronous>, transform_indices = @transform_4, window_bounds = array<i64: 1, 128>}, {pipeline_mode = #tpu.pipeline_mode<synchronous>, transform_indices = @transform_5, window_bounds = array<i64: 46, 1>}, {transform_indices = @transform_6, window_bounds = array<i64: 8, 128>}]} {
    %c0 = arith.constant 0 : index
    %c0_0 = arith.constant 0 : index
    %0 = vector.load %arg1[%c0, %c0_0] : memref<48x64xbf16, #tpu.memory_space<vmem>>, vector<46x64xbf16>
    %c0_1 = arith.constant 0 : index
    %c0_2 = arith.constant 0 : index
    %c0_3 = arith.constant 0 : index
    %1 = vector.load %arg2[%c0_1, %c0_2, %c0_3] : memref<3x64x128xbf16, #tpu.memory_space<vmem>>, vector<1x64x128xbf16>
    %2 = vector.shape_cast %1 : vector<1x64x128xbf16> to vector<64x128xbf16>
    %cst = arith.constant dense<0.000000e+00> : vector<46x128xf32>
    %3 = tpu.matmul %0, %2, %cst {dimension_numbers = #tpu.dot_dimension_numbers<[1], [0], [0], [1], [0, 0, 1, 1], [], []>} : vector<46x64xbf16>, vector<64x128xbf16>, vector<46x128xf32> -> vector<46x128xf32>
    %c1 = arith.constant 1 : index
    %c0_4 = arith.constant 0 : index
    %4 = vector.load %arg1[%c1, %c0_4] : memref<48x64xbf16, #tpu.memory_space<vmem>>, vector<46x64xbf16>
    %c1_5 = arith.constant 1 : index
    %c0_6 = arith.constant 0 : index
    %c0_7 = arith.constant 0 : index
    %5 = vector.load %arg2[%c1_5, %c0_6, %c0_7] : memref<3x64x128xbf16, #tpu.memory_space<vmem>>, vector<1x64x128xbf16>
    %6 = vector.shape_cast %5 : vector<1x64x128xbf16> to vector<64x128xbf16>
    %cst_8 = arith.constant dense<0.000000e+00> : vector<46x128xf32>
    %7 = tpu.matmul %4, %6, %cst_8 {dimension_numbers = #tpu.dot_dimension_numbers<[1], [0], [0], [1], [0, 0, 1, 1], [], []>} : vector<46x64xbf16>, vector<64x128xbf16>, vector<46x128xf32> -> vector<46x128xf32>
    %8 = arith.addf %3, %7 : vector<46x128xf32>
    %c2 = arith.constant 2 : index
    %c0_9 = arith.constant 0 : index
    %9 = vector.load %arg1[%c2, %c0_9] : memref<48x64xbf16, #tpu.memory_space<vmem>>, vector<46x64xbf16>
    %c2_10 = arith.constant 2 : index
    %c0_11 = arith.constant 0 : index
    %c0_12 = arith.constant 0 : index
    %10 = vector.load %arg2[%c2_10, %c0_11, %c0_12] : memref<3x64x128xbf16, #tpu.memory_space<vmem>>, vector<1x64x128xbf16>
    %11 = vector.shape_cast %10 : vector<1x64x128xbf16> to vector<64x128xbf16>
    %cst_13 = arith.constant dense<0.000000e+00> : vector<46x128xf32>
    %12 = tpu.matmul %9, %11, %cst_13 {dimension_numbers = #tpu.dot_dimension_numbers<[1], [0], [0], [1], [0, 0, 1, 1], [], []>} : vector<46x64xbf16>, vector<64x128xbf16>, vector<46x128xf32> -> vector<46x128xf32>
    %13 = arith.addf %8, %12 : vector<46x128xf32>
    %c0_14 = arith.constant 0 : index
    %c0_15 = arith.constant 0 : index
    %14 = vector.load %arg3[%c0_14, %c0_15] : memref<1x128xf32, #tpu.memory_space<vmem>>, vector<1x128xf32>
    %15 = vector.broadcast %14 : vector<1x128xf32> to vector<46x128xf32>
    %16 = arith.addf %13, %15 : vector<46x128xf32>
    %cst_16 = arith.constant 5.000000e-01 : f32
    %17 = vector.broadcast %cst_16 : f32 to vector<46x128xf32>
    %18 = arith.mulf %17, %16 : vector<46x128xf32>
    %cst_17 = arith.constant 0.707106769 : f32
    %19 = vector.broadcast %cst_17 : f32 to vector<46x128xf32>
    %20 = arith.mulf %16, %19 : vector<46x128xf32>
    %21 = math.erf %20 : vector<46x128xf32>
    %cst_18 = arith.constant 1.000000e+00 : f32
    %22 = vector.broadcast %cst_18 : f32 to vector<46x128xf32>
    %23 = arith.addf %22, %21 : vector<46x128xf32>
    %24 = arith.mulf %18, %23 : vector<46x128xf32>
    %c0_19 = arith.constant 0 : index
    %c0_20 = arith.constant 0 : index
    %25 = vector.load %arg6[%c0_19, %c0_20] : memref<46x1xf32, #tpu.memory_space<vmem>>, vector<46x1xf32>
    %26 = vector.broadcast %25 : vector<46x1xf32> to vector<46x128xf32>
    %27 = arith.mulf %24, %26 : vector<46x128xf32>
    %cst_21 = arith.constant 0.000000e+00 : f32
    %28 = vector.broadcast %cst_21 : f32 to vector<1x128xf32>
    %29 = arith.truncf %27 : vector<46x128xf32> to vector<46x128xbf16>
    %30 = vector.extract_strided_slice %27 {offsets = [0, 0], sizes = [45, 128], strides = [1, 1]} : vector<46x128xf32> to vector<45x128xf32>
    %31 = tpu.concatenate %28, %30 in 0 : vector<1x128xf32>, vector<45x128xf32> -> vector<46x128xf32>
    %32 = arith.truncf %31 : vector<46x128xf32> to vector<46x128xbf16>
    %33 = vector.extract_strided_slice %27 {offsets = [1, 0], sizes = [45, 128], strides = [1, 1]} : vector<46x128xf32> to vector<45x128xf32>
    %34 = tpu.concatenate %33, %28 in 0 : vector<45x128xf32>, vector<1x128xf32> -> vector<46x128xf32>
    %35 = arith.truncf %34 : vector<46x128xf32> to vector<46x128xbf16>
    %c0_22 = arith.constant 0 : index
    %c0_23 = arith.constant 0 : index
    %c0_24 = arith.constant 0 : index
    %36 = vector.load %arg4[%c0_22, %c0_23, %c0_24] : memref<3x128x128xbf16, #tpu.memory_space<vmem>>, vector<1x128x128xbf16>
    %37 = vector.shape_cast %36 : vector<1x128x128xbf16> to vector<128x128xbf16>
    %cst_25 = arith.constant dense<0.000000e+00> : vector<46x128xf32>
    %38 = tpu.matmul %32, %37, %cst_25 {dimension_numbers = #tpu.dot_dimension_numbers<[1], [0], [0], [1], [0, 0, 1, 1], [], []>} : vector<46x128xbf16>, vector<128x128xbf16>, vector<46x128xf32> -> vector<46x128xf32>
    %c1_26 = arith.constant 1 : index
    %c0_27 = arith.constant 0 : index
    %c0_28 = arith.constant 0 : index
    %39 = vector.load %arg4[%c1_26, %c0_27, %c0_28] : memref<3x128x128xbf16, #tpu.memory_space<vmem>>, vector<1x128x128xbf16>
    %40 = vector.shape_cast %39 : vector<1x128x128xbf16> to vector<128x128xbf16>
    %cst_29 = arith.constant dense<0.000000e+00> : vector<46x128xf32>
    %41 = tpu.matmul %29, %40, %cst_29 {dimension_numbers = #tpu.dot_dimension_numbers<[1], [0], [0], [1], [0, 0, 1, 1], [], []>} : vector<46x128xbf16>, vector<128x128xbf16>, vector<46x128xf32> -> vector<46x128xf32>
    %42 = arith.addf %38, %41 : vector<46x128xf32>
    %c2_30 = arith.constant 2 : index
    %c0_31 = arith.constant 0 : index
    %c0_32 = arith.constant 0 : index
    %43 = vector.load %arg4[%c2_30, %c0_31, %c0_32] : memref<3x128x128xbf16, #tpu.memory_space<vmem>>, vector<1x128x128xbf16>
    %44 = vector.shape_cast %43 : vector<1x128x128xbf16> to vector<128x128xbf16>
    %cst_33 = arith.constant dense<0.000000e+00> : vector<46x128xf32>
    %45 = tpu.matmul %35, %44, %cst_33 {dimension_numbers = #tpu.dot_dimension_numbers<[1], [0], [0], [1], [0, 0, 1, 1], [], []>} : vector<46x128xbf16>, vector<128x128xbf16>, vector<46x128xf32> -> vector<46x128xf32>
    %46 = arith.addf %42, %45 : vector<46x128xf32>
    %c0_34 = arith.constant 0 : index
    %c0_35 = arith.constant 0 : index
    %47 = vector.load %arg5[%c0_34, %c0_35] : memref<1x128xf32, #tpu.memory_space<vmem>>, vector<1x128xf32>
    %48 = vector.broadcast %47 : vector<1x128xf32> to vector<46x128xf32>
    %49 = arith.addf %46, %48 : vector<46x128xf32>
    %cst_36 = arith.constant 5.000000e-01 : f32
    %50 = vector.broadcast %cst_36 : f32 to vector<46x128xf32>
    %51 = arith.mulf %50, %49 : vector<46x128xf32>
    %cst_37 = arith.constant 0.707106769 : f32
    %52 = vector.broadcast %cst_37 : f32 to vector<46x128xf32>
    %53 = arith.mulf %49, %52 : vector<46x128xf32>
    %54 = math.erf %53 : vector<46x128xf32>
    %cst_38 = arith.constant 1.000000e+00 : f32
    %55 = vector.broadcast %cst_38 : f32 to vector<46x128xf32>
    %56 = arith.addf %55, %54 : vector<46x128xf32>
    %57 = arith.mulf %51, %56 : vector<46x128xf32>
    %58 = vector.extract_strided_slice %57 {offsets = [0, 0], sizes = [16, 128], strides = [1, 1]} : vector<46x128xf32> to vector<16x128xf32>
    %59 = vector.extract_strided_slice %58 {offsets = [0, 0], sizes = [16, 64], strides = [1, 1]} : vector<16x128xf32> to vector<16x64xf32>
    %60 = vector.extract_strided_slice %58 {offsets = [0, 64], sizes = [16, 64], strides = [1, 1]} : vector<16x128xf32> to vector<16x64xf32>
    %61 = arith.maximumf %59, %60 : vector<16x64xf32>
    %62 = vector.shape_cast %61 : vector<16x64xf32> to vector<8x2x64xf32>
    %cst_39 = arith.constant dense<0xFF800000> : vector<8x64xf32>
    %63 = vector.multi_reduction <maximumf>, %62, %cst_39 [1] : vector<8x2x64xf32> to vector<8x64xf32>
    %64 = vector.extract_strided_slice %57 {offsets = [24, 0], sizes = [16, 128], strides = [1, 1]} : vector<46x128xf32> to vector<16x128xf32>
    %65 = vector.extract_strided_slice %64 {offsets = [0, 0], sizes = [16, 64], strides = [1, 1]} : vector<16x128xf32> to vector<16x64xf32>
    %66 = vector.extract_strided_slice %64 {offsets = [0, 64], sizes = [16, 64], strides = [1, 1]} : vector<16x128xf32> to vector<16x64xf32>
    %67 = arith.maximumf %65, %66 : vector<16x64xf32>
    %68 = vector.shape_cast %67 : vector<16x64xf32> to vector<8x2x64xf32>
    %cst_40 = arith.constant dense<0xFF800000> : vector<8x64xf32>
    %69 = vector.multi_reduction <maximumf>, %68, %cst_40 [1] : vector<8x2x64xf32> to vector<8x64xf32>
    %70 = tpu.concatenate %63, %69 in 1 : vector<8x64xf32>, vector<8x64xf32> -> vector<8x128xf32>
    %c0_41 = arith.constant 0 : index
    %c0_42 = arith.constant 0 : index
    %71 = vector.load %arg7[%c0_41, %c0_42] : memref<8x128xf32, #tpu.memory_space<vmem>>, vector<8x128xf32>
    tpu.vector_store %arg7[%c0_41, %c0_42], %70 {strides = array<i32>} : memref<8x128xf32, #tpu.memory_space<vmem>>, vector<8x128xf32>,
    return
  }
  func.func @transform_0(%arg0: i32) -> (i32, i32) {
    %c0_i32 = arith.constant 0 : i32
    %c0_i32_0 = arith.constant 0 : i32
    return %arg0, %c0_i32 : i32, i32
  }
  func.func @transform_1(%arg0: i32) -> (i32, i32, i32) {
    %c0_i32 = arith.constant 0 : i32
    %c0_i32_0 = arith.constant 0 : i32
    %c0_i32_1 = arith.constant 0 : i32
    %c0_i32_2 = arith.constant 0 : i32
    return %c0_i32, %c0_i32_0, %c0_i32_1 : i32, i32, i32
  }
  func.func @transform_2(%arg0: i32) -> (i32, i32) {
    %c0_i32 = arith.constant 0 : i32
    %c0_i32_0 = arith.constant 0 : i32
    %c0_i32_1 = arith.constant 0 : i32
    return %c0_i32, %c0_i32_0 : i32, i32
  }
  func.func @transform_3(%arg0: i32) -> (i32, i32, i32) {
    %c0_i32 = arith.constant 0 : i32
    %c0_i32_0 = arith.constant 0 : i32
    %c0_i32_1 = arith.constant 0 : i32
    %c0_i32_2 = arith.constant 0 : i32
    return %c0_i32, %c0_i32_0, %c0_i32_1 : i32, i32, i32
  }
  func.func @transform_4(%arg0: i32) -> (i32, i32) {
    %c0_i32 = arith.constant 0 : i32
    %c0_i32_0 = arith.constant 0 : i32
    %c0_i32_1 = arith.constant 0 : i32
    return %c0_i32, %c0_i32_0 : i32, i32
  }
  func.func @transform_5(%arg0: i32) -> (i32, i32) {
    %c0_i32 = arith.constant 0 : i32
    %c0_i32_0 = arith.constant 0 : i32
    %c0_i32_1 = arith.constant 0 : i32
    return %c0_i32, %c0_i32_0 : i32, i32
  }
  func.func @transform_6(%arg0: i32) -> (i32, i32) {
    %c0_i32 = arith.constant 0 : i32
    %c0_i32_0 = arith.constant 0 : i32
    return %arg0, %c0_i32 : i32, i32
  }
}

</mosaic_0001>

<llo_original>
// kernel: tile.13
$region0: #{tile.13}
  #allocation0 [shape = 's32[1]{0}', space=sflag, size = 0x4, scoped, tag = 'scoped memory for tile.13']
  %s0 = inlined_call_operand.vmem [shape: f32[8], index: 0, kind: input, shape index: {}]
  %s1 = inlined_call_operand.vmem [shape: f32[16,8], index: 1, kind: output, shape index: {}]
  // Predicated region
  $region2: #{tile.13} parent=0 // pred_check
    _
  $region3: #{tile.13} parent=0 // pred_check_branch
    %3 = sbr.rel (0) target = $region5
  $region4: #{tile.13} parent=0 // pred_region
    _
  $region5: #{tile.13} parent=0 // pred_fallthru
    _
  %v4 = vld [vmem:[%s0] ss:$0 sm:$0xff]
  %5 = vst [vmem:[%s1] sm:$0xff] %v4
  %s6 = scalar_lea.vmem %s1, 8
  %7 = vst [vmem:[%s6] sm:$0xff] %v4

// kernel: tile.14
$region0: #{tile.14}
  %s0 = inlined_call_operand.vmem [shape: f32[16,8], index: 0, kind: input, shape index: {}]
  %s1 = inlined_call_operand.vmem [shape: f32[1,128], index: 1, kind: output, shape index: {}]
  $region1: #{tile.14} parent=0
    #allocation0 [shape = 'u8[4096]{0}', space=vmem, size = 0x1000, scoped, tag = 'scoped mem for output reshape']
    %v2 = vld [vmem:[%s0] sm:$0x1]
    %vm3 = vcmask 64512
    %4 = vst.msk [vmem:[#allocation0] sm:$0x1] %vm3, %v2
    %s5 = scalar_lea.vmem %s0, 15
    %v6 = vld [vmem:[%s5] sm:$0x1]
    %7 = vrot.lane.b32.xlu0 %v6, 120
    %v8 = vpop.permute.xlu0 %7
    %vm9 = vcmask 1048512
    %10 = vst.msk [vmem:[#allocation0] sm:$0x1] %vm9, %v8
    %s11 = scalar_lea.vmem %s0, 14
    %v12 = vld [vmem:[%s11] sm:$0x1]
    %13 = vrot.lane.b32.xlu0 %v12, 112
    %v14 = vpop.permute.xlu0 %13
    %vm15 = vcmask 982912
    %16 = vst.msk [vmem:[#allocation0] sm:$0x1] %vm15, %v14
    %s17 = scalar_lea.vmem %s0, 13
    %v18 = vld [vmem:[%s17] sm:$0x1]
    %19 = vrot.lane.b32.xlu0 %v18, 104
    %v20 = vpop.permute.xlu0 %19
    %vm21 = vcmask 917312
    %22 = vst.msk [vmem:[#allocation0] sm:$0x1] %vm21, %v20
    %s23 = scalar_lea.vmem %s0, 12
    %v24 = vld [vmem:[%s23] sm:$0x1]
    %25 = vrot.lane.b32.xlu0 %v24, 96
    %v26 = vpop.permute.xlu0 %25
    %vm27 = vcmask 851712
    %28 = vst.msk [vmem:[#allocation0] sm:$0x1] %vm27, %v26
    %s29 = scalar_lea.vmem %s0, 11
    %v30 = vld [vmem:[%s29] sm:$0x1]
    %31 = vrot.lane.b32.xlu0 %v30, 88
    %v32 = vpop.permute.xlu0 %31
    %vm33 = vcmask 786112
    %34 = vst.msk [vmem:[#allocation0] sm:$0x1] %vm33, %v32
    %s35 = scalar_lea.vmem %s0, 10
    %v36 = vld [vmem:[%s35] sm:$0x1]
    %37 = vrot.lane.b32.xlu0 %v36, 80
    %v38 = vpop.permute.xlu0 %37
    %vm39 = vcmask 720512
    %40 = vst.msk [vmem:[#allocation0] sm:$0x1] %vm39, %v38
    %s41 = scalar_lea.vmem %s0, 9
    %v42 = vld [vmem:[%s41] sm:$0x1]
    %43 = vrot.lane.b32.xlu0 %v42, 72
    %v44 = vpop.permute.xlu0 %43
    %vm45 = vcmask 654912
    %46 = vst.msk [vmem:[#allocation0] sm:$0x1] %vm45, %v44
    %s47 = scalar_lea.vmem %s0, 8
    %v48 = vld [vmem:[%s47] sm:$0x1]
    %49 = vrot.lane.b32.xlu0 %v48, 64
    %v50 = vpop.permute.xlu0 %49
    %vm51 = vcmask 589312
    %52 = vst.msk [vmem:[#allocation0] sm:$0x1] %vm51, %v50
    %s53 = scalar_lea.vmem %s0, 7
    %v54 = vld [vmem:[%s53] sm:$0x1]
    %55 = vrot.lane.b32.xlu0 %v54, 56
    %v56 = vpop.permute.xlu0 %55
    %vm57 = vcmask 523712
    %58 = vst.msk [vmem:[#allocation0] sm:$0x1] %vm57, %v56
    %s59 = scalar_lea.vmem %s0, 6
    %v60 = vld [vmem:[%s59] sm:$0x1]
    %61 = vrot.lane.b32.xlu0 %v60, 48
    %v62 = vpop.permute.xlu0 %61
    %vm63 = vcmask 458112
    %64 = vst.msk [vmem:[#allocation0] sm:$0x1] %vm63, %v62
    %s65 = scalar_lea.vmem %s0, 5
    %v66 = vld [vmem:[%s65] sm:$0x1]
    %67 = vrot.lane.b32.xlu0 %v66, 40
    %v68 = vpop.permute.xlu0 %67
    %vm69 = vcmask 392512
    %70 = vst.msk [vmem:[#allocation0] sm:$0x1] %vm69, %v68
    %s71 = scalar_lea.vmem %s0, 4
    %v72 = vld [vmem:[%s71] sm:$0x1]
    %73 = vrot.lane.b32.xlu0 %v72, 32
    %v74 = vpop.permute.xlu0 %73
    %vm75 = vcmask 326912
    %76 = vst.msk [vmem:[#allocation0] sm:$0x1] %vm75, %v74
    %s77 = scalar_lea.vmem %s0, 3
    %v78 = vld [vmem:[%s77] sm:$0x1]
    %79 = vrot.lane.b32.xlu0 %v78, 24
    %v80 = vpop.permute.xlu0 %79
    %vm81 = vcmask 261312
    %82 = vst.msk [vmem:[#allocation0] sm:$0x1] %vm81, %v80
    %s83 = scalar_lea.vmem %s0, 2
    %v84 = vld [vmem:[%s83] sm:$0x1]
    %85 = vrot.lane.b32.xlu0 %v84, 16
    %v86 = vpop.permute.xlu0 %85
    %vm87 = vcmask 195712
    %88 = vst.msk [vmem:[#allocation0] sm:$0x1] %vm87, %v86
    %s89 = scalar_lea.vmem %s0, 1
    %v90 = vld [vmem:[%s89] sm:$0x1]
    %91 = vrot.lane.b32.xlu0 %v90, 8
    %v92 = vpop.permute.xlu0 %91
    %vm93 = vcmask 130112
    %94 = vst.msk [vmem:[#allocation0] sm:$0x1] %vm93, %v92
    %s96 = sshll.u32 1, 1
    %s97 = ssub.s32 %s96, 1
    %v99 = vld [vmem:[#allocation0] sm:%s97]
    %s100 = sshll.u32 1, 1
    %s101 = ssub.s32 %s100, 1
    %102 = vst [vmem:[%s1] sm:%s101] %v99

// kernel: conv_block_forward.1
$region0: #{conv_block_forward.1}
  #allocation0 [shape = 'u32[]', space=smem, size = 0x4, offset = 0x4, fixed_abs, tag = 'smem constant byte address 0x4 - core index']
  #allocation1 [shape = 'u32[144,128]{1,0:T(1,128)}', space=vmem, size = 0x12000, scoped, tag = 'internal scratch']
  %s0 = inlined_call_operand.vmem [shape: bf16[48,64], index: 0, kind: input, shape index: {}]
  %s1 = inlined_call_operand.vmem [shape: bf16[3,64,128], index: 1, kind: input, shape index: {}]
  %s2 = inlined_call_operand.vmem [shape: f32[1,128], index: 2, kind: input, shape index: {}]
  %s3 = inlined_call_operand.vmem [shape: bf16[3,128,128], index: 3, kind: input, shape index: {}]
  %s4 = inlined_call_operand.vmem [shape: f32[1,128], index: 4, kind: input, shape index: {}]
  %s5 = inlined_call_operand.vmem [shape: f32[46,1], index: 5, kind: input, shape index: {}]
  %s6 = inlined_call_operand.vmem [shape: f32[8,128], index: 6, kind: output, shape index: {}]
  %s7 = sld [smem:[#allocation0]]
  $region34: #{conv_block_forward.1} parent=0
    _
  %s9 = ssub.s32 1, %s7
  %s10 = scalar_select 0, %s9, %s7
  // Predicated region
  $region2: #{conv_block_forward.1} parent=0 // pred_check
    _
  $region3: #{conv_block_forward.1} parent=0 // pred_check_branch
    %12 = sbr.rel (0) target = $region5
  $region4: #{conv_block_forward.1} parent=0 // pred_region
    _
  $region5: #{conv_block_forward.1} parent=0 // pred_fallthru
    _
  // Predicated region
  $region6: #{conv_block_forward.1} parent=0 // pred_check
    _
  $region7: #{conv_block_forward.1} parent=0 // pred_check_branch
    %14 = sbr.rel (0) target = $region9
  $region8: #{conv_block_forward.1} parent=0 // pred_region
    _
  $region9: #{conv_block_forward.1} parent=0 // pred_fallthru
    _
  // Predicated region
  $region10: #{conv_block_forward.1} parent=0 // pred_check
    _
  $region11: #{conv_block_forward.1} parent=0 // pred_check_branch
    %16 = sbr.rel (0) target = $region13
  $region12: #{conv_block_forward.1} parent=0 // pred_region
    _
  $region13: #{conv_block_forward.1} parent=0 // pred_fallthru
    _
  // Predicated region
  $region14: #{conv_block_forward.1} parent=0 // pred_check
    _
  $region15: #{conv_block_forward.1} parent=0 // pred_check_branch
    %18 = sbr.rel (0) target = $region17
  $region16: #{conv_block_forward.1} parent=0 // pred_region
    _
  $region17: #{conv_block_forward.1} parent=0 // pred_fallthru
    _
  // Predicated region
  $region18: #{conv_block_forward.1} parent=0 // pred_check
    _
  $region19: #{conv_block_forward.1} parent=0 // pred_check_branch
    %20 = sbr.rel (0) target = $region21
  $region20: #{conv_block_forward.1} parent=0 // pred_region
    _
  $region21: #{conv_block_forward.1} parent=0 // pred_fallthru
    _
  // Predicated region
  $region22: #{conv_block_forward.1} parent=0 // pred_check
    _
  $region23: #{conv_block_forward.1} parent=0 // pred_check_branch
    %22 = sbr.rel (0) target = $region25
  $region24: #{conv_block_forward.1} parent=0 // pred_region
    _
  $region25: #{conv_block_forward.1} parent=0 // pred_fallthru
    _
  %v24 = vld [vmem:[%s0] sm:$0xf]
  %v25 = vld [vmem:[%s0 + $0x4] sm:$0xf]
  %v26 = vld [vmem:[%s0 + $0x8] sm:$0xf]
  %v27 = vld [vmem:[%s0 + $0xc] sm:$0xf]
  %v28 = vld [vmem:[%s0 + $0x10] sm:$0xf]
  %v29 = vld [vmem:[%s0 + $0x14] sm:$0x7]
  %v30 = vld [vmem:[%s1] sm:$0xf]
  %v31 = vld [vmem:[%s1 + $0x4] sm:$0xf]
  %v32 = vld [vmem:[%s1 + $0x8] sm:$0xf]
  %v33 = vld [vmem:[%s1 + $0xc] sm:$0xf]
  %v34 = vld [vmem:[%s1 + $0x10] sm:$0xf]
  %v35 = vld [vmem:[%s1 + $0x14] sm:$0xf]
  %v36 = vld [vmem:[%s1 + $0x18] sm:$0xf]
  %v37 = vld [vmem:[%s1 + $0x1c] sm:$0xf]
  %v38 = vld [vmem:[%s0 + $0x14] sm:$0xf]
  %s39 = scalar_lea.vmem %s1, 32
  %v40 = vld [vmem:[%s39] sm:$0xf]
  %v41 = vld [vmem:[%s39 + $0x4] sm:$0xf]
  %v42 = vld [vmem:[%s39 + $0x8] sm:$0xf]
  %v43 = vld [vmem:[%s39 + $0xc] sm:$0xf]
  %v44 = vld [vmem:[%s39 + $0x10] sm:$0xf]
  %v45 = vld [vmem:[%s39 + $0x14] sm:$0xf]
  %v46 = vld [vmem:[%s39 + $0x18] sm:$0xf]
  %v47 = vld [vmem:[%s39 + $0x1c] sm:$0xf]
  %v54 = vunpack.c.l.b16 %v24
  %v55 = vunpack.c.l.b16 %v25
  %v56 = vunpack.c.l.b16 %v26
  %v57 = vunpack.c.l.b16 %v27
  %v58 = vunpack.c.l.b16 %v28
  %v59 = vunpack.c.l.b16 %v38
  %v60 = vpack.c.b16 %v55, %v54
  %v61 = vpack.c.b16 %v57, %v56
  %v62 = vpack.c.b16 %v59, %v58
  %vm63 = vsmask.f32 7424
  %v65 = vshrl.u32 %v60, 16
  %v67 = vshll.u32 %v60, 16
  %v69 = vrot.slane %v67, 1
  %v70 = vor.u32 %v65, %v69
  %v72 = vshll.u32 %v61, 16
  %v74 = vrot.slane %v72, 1
  %v75 = vsel %vm63, %v70, %v74
  %v76 = vshrl.u32 %v61, 16
  %v78 = vor.u32 %v76, %v74
  %v80 = vshll.u32 %v62, 16
  %v82 = vrot.slane %v80, 1
  %v83 = vsel %vm63, %v78, %v82
  %v84 = vshrl.u32 %v62, 16
  %v86 = vor.u32 %v84, %v82
  %v95 = vunpack.c.l.b16 %v40
  %v96 = vunpack.c.l.b16 %v41
  %v97 = vunpack.c.l.b16 %v42
  %v98 = vunpack.c.l.b16 %v43
  %v99 = vunpack.c.l.b16 %v44
  %v100 = vunpack.c.l.b16 %v45
  %v101 = vunpack.c.l.b16 %v46
  %v102 = vunpack.c.l.b16 %v47
  %v103 = vpack.c.b16 %v96, %v95
  %v104 = vpack.c.b16 %v98, %v97
  %v105 = vpack.c.b16 %v100, %v99
  %v106 = vpack.c.b16 %v102, %v101
  %vm111 = vcmask 523264
  %v113 = vsel %vm111, %v75, 0
  %v116 = vsel %vm111, %v83, 0
  %v119 = vsel %vm111, %v86, 0
  %121 = vmatprep.subr.bf16.mxu0 0
  %122 = vmatpush1.bf16.msra.mxu0 0
  %123 = vmatprep.subr.bf16.mxu0 0
  %124 = vmatpush1.bf16.msra.mxu0 0
  %125 = vmatprep.subr.bf16.mxu0 0
  %126 = vmatpush1.bf16.msra.mxu0 0
  %127 = vmatprep.subr.bf16.mxu0 0
  %128 = vmatpush1.bf16.msra.mxu0 0
  %129 = vmatprep.subr.bf16.mxu0 0
  %130 = vmatpush1.bf16.msra.mxu0 %v106
  %131 = vmatprep.subr.bf16.mxu0 0
  %132 = vmatpush1.bf16.msra.mxu0 %v105
  %133 = vmatprep.subr.bf16.mxu0 0
  %134 = vmatpush1.bf16.msra.mxu0 %v104
  %135 = vmatprep.subr.bf16.mxu0 0
  %136 = vmatpush1.bf16.msra.mxu0 %v103
  %137 = vmatprep.subr.bf16.mxu0 0
  %138 = vmatpush2.bf16.msra.mxu0 0
  %139 = vmatprep.subr.bf16.mxu0 0
  %140 = vmatpush2.bf16.msra.mxu0 0
  %141 = vmatprep.subr.bf16.mxu0 0
  %142 = vmatpush2.bf16.msra.mxu0 0
  %143 = vmatprep.subr.bf16.mxu0 0
  %144 = vmatpush2.bf16.msra.mxu0 0
  %145 = vmatprep.subr.bf16.mxu0 0
  %146 = vmatpush2.bf16.msra.mxu0 0
  %147 = vmatprep.subr.bf16.mxu0 0
  %148 = vmatpush2.bf16.msra.mxu0 0
  %149 = vmatprep.subr.bf16.mxu0 0
  %150 = vmatpush2.bf16.msra.mxu0 0
  %151 = vmatprep.subr.bf16.mxu0 0
  %152 = vmatpush2.bf16.msra.mxu0 0
  %153 = vmatprep.mubr.bf16.mxu0 0
  %154 = vmatmul.mubr.bf16.gmra.mxu0 %v113
  %v155 = vpop.f32.mrf.mxu0
  %v156 = vadd.f32 0.0, %v155
  %v157 = vpop.f32.mrf.mxu0
  %v158 = vpop.f32.mrf.mxu0
  %v159 = vadd.f32 0.0, %v158
  %v160 = vpop.f32.mrf.mxu0
  %161 = vmatprep.mubr.bf16.mxu0 0
  %162 = vmatmul.mubr.bf16.gmra.mxu0 %v116
  %v163 = vpop.f32.mrf.mxu0
  %v164 = vadd.f32 0.0, %v163
  %v165 = vpop.f32.mrf.mxu0
  %v166 = vpop.f32.mrf.mxu0
  %v167 = vadd.f32 0.0, %v166
  %v168 = vpop.f32.mrf.mxu0
  %169 = vmatprep.mubr.bf16.mxu0 0
  %170 = vmatmul.mubr.bf16.gmra.mxu0 %v119
  %v171 = vpop.f32.mrf.mxu0
  %v172 = vadd.f32 0.0, %v171
  %v173 = vpop.f32.mrf.mxu0
  %v174 = vpop.f32.mrf.mxu0
  %v175 = vadd.f32 0.0, %v174
  %v176 = vpop.f32.mrf.mxu0
  %177 = vdwg.mxu0
  %v179 = vunpack.c.l.b16 %v29
  %v180 = vpack.c.b16 %v179, %v58
  %v189 = vunpack.c.l.b16 %v30
  %v190 = vunpack.c.l.b16 %v31
  %v191 = vunpack.c.l.b16 %v32
  %v192 = vunpack.c.l.b16 %v33
  %v193 = vunpack.c.l.b16 %v34
  %v194 = vunpack.c.l.b16 %v35
  %v195 = vunpack.c.l.b16 %v36
  %v196 = vunpack.c.l.b16 %v37
  %v197 = vpack.c.b16 %v190, %v189
  %v198 = vpack.c.b16 %v192, %v191
  %v199 = vpack.c.b16 %v194, %v193
  %v200 = vpack.c.b16 %v196, %v195
  %v205 = vsel %vm111, %v60, 0
  %v207 = vsel %vm111, %v61, 0
  %v210 = vsel %vm111, %v180, 0
  %212 = vmatprep.subr.bf16.mxu0 0
  %213 = vmatpush1.bf16.msra.mxu0 0
  %214 = vmatprep.subr.bf16.mxu0 0
  %215 = vmatpush1.bf16.msra.mxu0 0
  %216 = vmatprep.subr.bf16.mxu0 0
  %217 = vmatpush1.bf16.msra.mxu0 0
  %218 = vmatprep.subr.bf16.mxu0 0
  %219 = vmatpush1.bf16.msra.mxu0 0
  %220 = vmatprep.subr.bf16.mxu0 0
  %221 = vmatpush1.bf16.msra.mxu0 %v200
  %222 = vmatprep.subr.bf16.mxu0 0
  %223 = vmatpush1.bf16.msra.mxu0 %v199
  %224 = vmatprep.subr.bf16.mxu0 0
  %225 = vmatpush1.bf16.msra.mxu0 %v198
  %226 = vmatprep.subr.bf16.mxu0 0
  %227 = vmatpush1.bf16.msra.mxu0 %v197
  %228 = vmatprep.subr.bf16.mxu0 0
  %229 = vmatpush2.bf16.msra.mxu0 0
  %230 = vmatprep.subr.bf16.mxu0 0
  %231 = vmatpush2.bf16.msra.mxu0 0
  %232 = vmatprep.subr.bf16.mxu0 0
  %233 = vmatpush2.bf16.msra.mxu0 0
  %234 = vmatprep.subr.bf16.mxu0 0
  %235 = vmatpush2.bf16.msra.mxu0 0
  %236 = vmatprep.subr.bf16.mxu0 0
  %237 = vmatpush2.bf16.msra.mxu0 0
  %238 = vmatprep.subr.bf16.mxu0 0
  %239 = vmatpush2.bf16.msra.mxu0 0
  %240 = vmatprep.subr.bf16.mxu0 0
  %241 = vmatpush2.bf16.msra.mxu0 0
  %242 = vmatprep.subr.bf16.mxu0 0
  %243 = vmatpush2.bf16.msra.mxu0 0
  %244 = vmatprep.mubr.bf16.mxu0 0
  %245 = vmatmul.mubr.bf16.gmra.mxu0 %v205
  %v246 = vpop.f32.mrf.mxu0
  %v247 = vadd.f32 %v156, %v246
  %v248 = vpop.f32.mrf.mxu0
  %v249 = vpop.f32.mrf.mxu0
  %v250 = vadd.f32 %v159, %v249
  %v251 = vpop.f32.mrf.mxu0
  %252 = vmatprep.mubr.bf16.mxu0 0
  %253 = vmatmul.mubr.bf16.gmra.mxu0 %v207
  %v254 = vpop.f32.mrf.mxu0
  %v255 = vadd.f32 %v164, %v254
  %v256 = vpop.f32.mrf.mxu0
  %v257 = vpop.f32.mrf.mxu0
  %v258 = vadd.f32 %v167, %v257
  %v259 = vpop.f32.mrf.mxu0
  %260 = vmatprep.mubr.bf16.mxu0 0
  %261 = vmatmul.mubr.bf16.gmra.mxu0 %v210
  %v262 = vpop.f32.mrf.mxu0
  %v263 = vadd.f32 %v172, %v262
  %v264 = vpop.f32.mrf.mxu0
  %v265 = vpop.f32.mrf.mxu0
  %v266 = vadd.f32 %v175, %v265
  %v267 = vpop.f32.mrf.mxu0
  %268 = vdwg.mxu0
  %v269 = vld [vmem:[%s0] sm:$0xe]
  %s270 = scalar_lea.vmem %s1, 64
  %v271 = vld [vmem:[%s270] sm:$0xf]
  %v272 = vld [vmem:[%s270 + $0x4] sm:$0xf]
  %v273 = vld [vmem:[%s270 + $0x8] sm:$0xf]
  %v274 = vld [vmem:[%s270 + $0xc] sm:$0xf]
  %v275 = vld [vmem:[%s270 + $0x10] sm:$0xf]
  %v276 = vld [vmem:[%s270 + $0x14] sm:$0xf]
  %v277 = vld [vmem:[%s270 + $0x18] sm:$0xf]
  %v278 = vld [vmem:[%s270 + $0x1c] sm:$0xf]
  %v280 = vunpack.c.l.b16 %v269
  %v281 = vpack.c.b16 %v55, %v280
  %vm282 = vcmask 1046528
  %v283 = vrot.slane %v281, 1
  %v284 = vrot.slane %v61, 1
  %v285 = vsel %vm282, %v283, %v284
  %v286 = vrot.slane %v62, 1
  %v287 = vsel %vm282, %v284, %v286
  %v296 = vunpack.c.l.b16 %v271
  %v297 = vunpack.c.l.b16 %v272
  %v298 = vunpack.c.l.b16 %v273
  %v299 = vunpack.c.l.b16 %v274
  %v300 = vunpack.c.l.b16 %v275
  %v301 = vunpack.c.l.b16 %v276
  %v302 = vunpack.c.l.b16 %v277
  %v303 = vunpack.c.l.b16 %v278
  %v304 = vpack.c.b16 %v297, %v296
  %v305 = vpack.c.b16 %v299, %v298
  %v306 = vpack.c.b16 %v301, %v300
  %v307 = vpack.c.b16 %v303, %v302
  %v313 = vsel %vm111, %v285, 0
  %v316 = vsel %vm111, %v287, 0
  %v319 = vsel %vm111, %v286, 0
  %321 = vmatprep.subr.bf16.mxu0 0
  %322 = vmatpush1.bf16.msra.mxu0 0
  %323 = vmatprep.subr.bf16.mxu0 0
  %324 = vmatpush1.bf16.msra.mxu0 0
  %325 = vmatprep.subr.bf16.mxu0 0
  %326 = vmatpush1.bf16.msra.mxu0 0
  %327 = vmatprep.subr.bf16.mxu0 0
  %328 = vmatpush1.bf16.msra.mxu0 0
  %329 = vmatprep.subr.bf16.mxu0 0
  %330 = vmatpush1.bf16.msra.mxu0 %v307
  %331 = vmatprep.subr.bf16.mxu0 0
  %332 = vmatpush1.bf16.msra.mxu0 %v306
  %333 = vmatprep.subr.bf16.mxu0 0
  %334 = vmatpush1.bf16.msra.mxu0 %v305
  %335 = vmatprep.subr.bf16.mxu0 0
  %336 = vmatpush1.bf16.msra.mxu0 %v304
  %337 = vmatprep.subr.bf16.mxu0 0
  %338 = vmatpush2.bf16.msra.mxu0 0
  %339 = vmatprep.subr.bf16.mxu0 0
  %340 = vmatpush2.bf16.msra.mxu0 0
  %341 = vmatprep.subr.bf16.mxu0 0
  %342 = vmatpush2.bf16.msra.mxu0 0
  %343 = vmatprep.subr.bf16.mxu0 0
  %344 = vmatpush2.bf16.msra.mxu0 0
  %345 = vmatprep.subr.bf16.mxu0 0
  %346 = vmatpush2.bf16.msra.mxu0 0
  %347 = vmatprep.subr.bf16.mxu0 0
  %348 = vmatpush2.bf16.msra.mxu0 0
  %349 = vmatprep.subr.bf16.mxu0 0
  %350 = vmatpush2.bf16.msra.mxu0 0
  %351 = vmatprep.subr.bf16.mxu0 0
  %352 = vmatpush2.bf16.msra.mxu0 0
  %353 = vmatprep.mubr.bf16.mxu0 0
  %354 = vmatmul.mubr.bf16.gmra.mxu0 %v313
  %v355 = vpop.f32.mrf.mxu0
  %v356 = vadd.f32 0.0, %v355
  %v357 = vpop.f32.mrf.mxu0
  %v358 = vpop.f32.mrf.mxu0
  %v359 = vadd.f32 0.0, %v358
  %v360 = vpop.f32.mrf.mxu0
  %361 = vmatprep.mubr.bf16.mxu0 0
  %362 = vmatmul.mubr.bf16.gmra.mxu0 %v316
  %v363 = vpop.f32.mrf.mxu0
  %v364 = vadd.f32 0.0, %v363
  %v365 = vpop.f32.mrf.mxu0
  %v366 = vpop.f32.mrf.mxu0
  %v367 = vadd.f32 0.0, %v366
  %v368 = vpop.f32.mrf.mxu0
  %369 = vmatprep.mubr.bf16.mxu0 0
  %370 = vmatmul.mubr.bf16.gmra.mxu0 %v319
  %v371 = vpop.f32.mrf.mxu0
  %v372 = vadd.f32 0.0, %v371
  %v373 = vpop.f32.mrf.mxu0
  %v374 = vpop.f32.mrf.mxu0
  %v375 = vadd.f32 0.0, %v374
  %v376 = vpop.f32.mrf.mxu0
  %377 = vdwg.mxu0
  %v378 = vadd.f32 %v247, %v356
  %v379 = vadd.f32 %v250, %v359
  %v380 = vadd.f32 %v255, %v364
  %v381 = vadd.f32 %v258, %v367
  %v382 = vadd.f32 %v263, %v372
  %v383 = vadd.f32 %v266, %v375
  %v384 = vld [vmem:[%s2] sm:$0x1]
  %v386 = vlaneseq
  %v387 = vshrl.u32 %v386, 7
  %v388 = vsub.s32 0, %v387
  %v389 = vrot.slane %v384, %v388
  %v391 = vadd.f32 %v378, %v389
  %v392 = vadd.f32 %v379, %v389
  %v393 = vadd.f32 %v380, %v389
  %v394 = vadd.f32 %v381, %v389
  %v395 = vadd.f32 %v382, %v389
  %v396 = vadd.f32 %v383, %v389
  %v397 = vmul.f32 %v391, 0.5
  %v398 = vmul.f32 %v392, 0.5
  %v399 = vmul.f32 %v393, 0.5
  %v400 = vmul.f32 %v394, 0.5
  %v401 = vmul.f32 %v395, 0.5
  %v402 = vmul.f32 %v396, 0.5
  %v403 = vmul.f32 %v391, 0.70710677
  %v404 = vmul.f32 %v392, 0.70710677
  %v405 = vmul.f32 %v393, 0.70710677
  %v406 = vmul.f32 %v394, 0.70710677
  %v407 = vmul.f32 %v395, 0.70710677
  %v408 = vmul.f32 %v396, 0.70710677
  %v409 = verf.f32.pop %v403
  %v410 = verf.f32.pop %v404
  %v411 = verf.f32.pop %v405
  %v412 = verf.f32.pop %v406
  %v413 = verf.f32.pop %v407
  %v414 = verf.f32.pop %v408
  %v415 = vadd.f32 %v409, 1.0
  %v416 = vadd.f32 %v410, 1.0
  %v417 = vadd.f32 %v411, 1.0
  %v418 = vadd.f32 %v412, 1.0
  %v419 = vadd.f32 %v413, 1.0
  %v420 = vadd.f32 %v414, 1.0
  %v421 = vmul.f32 %v397, %v415
  %v422 = vmul.f32 %v398, %v416
  %v423 = vmul.f32 %v399, %v417
  %v424 = vmul.f32 %v400, %v418
  %v425 = vmul.f32 %v401, %v419
  %v426 = vmul.f32 %v402, %v420
  %v427 = vld [vmem:[%s5] sm:$0xff]
  %v428 = vld [vmem:[%s5 + $0x8] sm:$0xff]
  %v429 = vld [vmem:[%s5 + $0x10] sm:$0xff]
  %v430 = vld [vmem:[%s5 + $0x18] sm:$0xff]
  %v431 = vld [vmem:[%s5 + $0x20] sm:$0xff]
  %v432 = vld [vmem:[%s5 + $0x28] sm:$0x3f]
  %434 = vset.pattern.permute.xlu0 0
  %435 = vperm.xlu0 %434, %v427
  %v436 = vpop.permute.xlu0 %435
  %439 = vset.pattern.permute.xlu0 0
  %440 = vperm.xlu0 %439, %v428
  %v441 = vpop.permute.xlu0 %440
  %444 = vset.pattern.permute.xlu0 0
  %445 = vperm.xlu0 %444, %v429
  %v446 = vpop.permute.xlu0 %445
  %449 = vset.pattern.permute.xlu0 0
  %450 = vperm.xlu0 %449, %v430
  %v451 = vpop.permute.xlu0 %450
  %454 = vset.pattern.permute.xlu0 0
  %455 = vperm.xlu0 %454, %v431
  %v456 = vpop.permute.xlu0 %455
  %459 = vset.pattern.permute.xlu0 0
  %460 = vperm.xlu0 %459, %v432
  %v461 = vpop.permute.xlu0 %460
  %v463 = vmul.f32 %v421, %v436
  %v464 = vmul.f32 %v422, %v441
  %v465 = vmul.f32 %v423, %v446
  %v466 = vmul.f32 %v424, %v451
  %v467 = vmul.f32 %v425, %v456
  %v468 = vmul.f32 %v426, %v461
  %v469 = vpack.c.bf16 %v464, %v463
  %v470 = vpack.c.bf16 %v466, %v465
  %v471 = vpack.c.bf16 %v468, %v467
  %vm478 = vcmask 1040384
  %v479 = vrot.slane %v463, 7
  %v480 = vrot.slane %v464, 7
  %v481 = vsel %vm478, %v479, %v480
  %v482 = vrot.slane %v465, 7
  %v483 = vsel %vm478, %v480, %v482
  %v484 = vrot.slane %v466, 7
  %v485 = vsel %vm478, %v482, %v484
  %v486 = vrot.slane %v467, 7
  %v487 = vsel %vm478, %v484, %v486
  %v488 = vrot.slane %v468, 7
  %v489 = vsel %vm478, %v486, %v488
  %v496 = vsel %vm478, 0.0, %v479
  %v497 = vpack.c.bf16 %v481, %v496
  %v498 = vpack.c.bf16 %v485, %v483
  %v499 = vpack.c.bf16 %v489, %v487
  %vm500 = vcmask 1046528
  %v501 = vrot.slane %v463, 1
  %v502 = vrot.slane %v464, 1
  %v503 = vsel %vm500, %v501, %v502
  %v504 = vrot.slane %v465, 1
  %v505 = vsel %vm500, %v502, %v504
  %v506 = vrot.slane %v466, 1
  %v507 = vsel %vm500, %v504, %v506
  %v508 = vrot.slane %v467, 1
  %v509 = vsel %vm500, %v506, %v508
  %v510 = vrot.slane %v468, 1
  %v511 = vsel %vm500, %v508, %v510
  %vm518 = vcmask 1044480
  %v519 = vsel %vm518, %v510, 0.0
  %v520 = vpack.c.bf16 %v505, %v503
  %v521 = vpack.c.bf16 %v509, %v507
  %v522 = vpack.c.bf16 %v519, %v511
  %v523 = vld [vmem:[%s3] sm:$0xf]
  %v524 = vld [vmem:[%s3 + $0x4] sm:$0xf]
  %v525 = vld [vmem:[%s3 + $0x8] sm:$0xf]
  %v526 = vld [vmem:[%s3 + $0xc] sm:$0xf]
  %v527 = vld [vmem:[%s3 + $0x10] sm:$0xf]
  %v528 = vld [vmem:[%s3 + $0x14] sm:$0xf]
  %v529 = vld [vmem:[%s3 + $0x18] sm:$0xf]
  %v530 = vld [vmem:[%s3 + $0x1c] sm:$0xf]
  %v531 = vld [vmem:[%s3 + $0x20] sm:$0xf]
  %v532 = vld [vmem:[%s3 + $0x24] sm:$0xf]
  %v533 = vld [vmem:[%s3 + $0x28] sm:$0xf]
  %v534 = vld [vmem:[%s3 + $0x2c] sm:$0xf]
  %v535 = vld [vmem:[%s3 + $0x30] sm:$0xf]
  %v536 = vld [vmem:[%s3 + $0x34] sm:$0xf]
  %v537 = vld [vmem:[%s3 + $0x38] sm:$0xf]
  %v538 = vld [vmem:[%s3 + $0x3c] sm:$0xf]
  %s539 = scalar_lea.vmem %s3, 64
  %v540 = vld [vmem:[%s539] sm:$0xf]
  %v541 = vld [vmem:[%s539 + $0x4] sm:$0xf]
  %v542 = vld [vmem:[%s539 + $0x8] sm:$0xf]
  %v543 = vld [vmem:[%s539 + $0xc] sm:$0xf]
  %v544 = vld [vmem:[%s539 + $0x10] sm:$0xf]
  %v545 = vld [vmem:[%s539 + $0x14] sm:$0xf]
  %v546 = vld [vmem:[%s539 + $0x18] sm:$0xf]
  %v547 = vld [vmem:[%s539 + $0x1c] sm:$0xf]
  %v548 = vld [vmem:[%s539 + $0x20] sm:$0xf]
  %v549 = vld [vmem:[%s539 + $0x24] sm:$0xf]
  %v550 = vld [vmem:[%s539 + $0x28] sm:$0xf]
  %v551 = vld [vmem:[%s539 + $0x2c] sm:$0xf]
  %v552 = vld [vmem:[%s539 + $0x30] sm:$0xf]
  %v553 = vld [vmem:[%s539 + $0x34] sm:$0xf]
  %v554 = vld [vmem:[%s539 + $0x38] sm:$0xf]
  %v555 = vld [vmem:[%s539 + $0x3c] sm:$0xf]
  %v572 = vunpack.c.l.b16 %v540
  %v573 = vunpack.c.l.b16 %v541
  %v574 = vunpack.c.l.b16 %v542
  %v575 = vunpack.c.l.b16 %v543
  %v576 = vunpack.c.l.b16 %v544
  %v577 = vunpack.c.l.b16 %v545
  %v578 = vunpack.c.l.b16 %v546
  %v579 = vunpack.c.l.b16 %v547
  %v580 = vunpack.c.l.b16 %v548
  %v581 = vunpack.c.l.b16 %v549
  %v582 = vunpack.c.l.b16 %v550
  %v583 = vunpack.c.l.b16 %v551
  %v584 = vunpack.c.l.b16 %v552
  %v585 = vunpack.c.l.b16 %v553
  %v586 = vunpack.c.l.b16 %v554
  %v587 = vunpack.c.l.b16 %v555
  %v588 = vpack.c.b16 %v573, %v572
  %v589 = vpack.c.b16 %v575, %v574
  %v590 = vpack.c.b16 %v577, %v576
  %v591 = vpack.c.b16 %v579, %v578
  %v592 = vpack.c.b16 %v581, %v580
  %v593 = vpack.c.b16 %v583, %v582
  %v594 = vpack.c.b16 %v585, %v584
  %v595 = vpack.c.b16 %v587, %v586
  %604 = vmatprep.subr.bf16.mxu0 0
  %605 = vmatpush1.bf16.msra.mxu0 %v595
  %606 = vmatprep.subr.bf16.mxu0 0
  %607 = vmatpush1.bf16.msra.mxu0 %v594
  %608 = vmatprep.subr.bf16.mxu0 0
  %609 = vmatpush1.bf16.msra.mxu0 %v593
  %610 = vmatprep.subr.bf16.mxu0 0
  %611 = vmatpush1.bf16.msra.mxu0 %v592
  %612 = vmatprep.subr.bf16.mxu0 0
  %613 = vmatpush1.bf16.msra.mxu0 %v591
  %614 = vmatprep.subr.bf16.mxu0 0
  %615 = vmatpush1.bf16.msra.mxu0 %v590
  %616 = vmatprep.subr.bf16.mxu0 0
  %617 = vmatpush1.bf16.msra.mxu0 %v589
  %618 = vmatprep.subr.bf16.mxu0 0
  %619 = vmatpush1.bf16.msra.mxu0 %v588
  %620 = vmatprep.subr.bf16.mxu0 0
  %621 = vmatpush2.bf16.msra.mxu0 0
  %622 = vmatprep.subr.bf16.mxu0 0
  %623 = vmatpush2.bf16.msra.mxu0 0
  %624 = vmatprep.subr.bf16.mxu0 0
  %625 = vmatpush2.bf16.msra.mxu0 0
  %626 = vmatprep.subr.bf16.mxu0 0
  %627 = vmatpush2.bf16.msra.mxu0 0
  %628 = vmatprep.subr.bf16.mxu0 0
  %629 = vmatpush2.bf16.msra.mxu0 0
  %630 = vmatprep.subr.bf16.mxu0 0
  %631 = vmatpush2.bf16.msra.mxu0 0
  %632 = vmatprep.subr.bf16.mxu0 0
  %633 = vmatpush2.bf16.msra.mxu0 0
  %634 = vmatprep.subr.bf16.mxu0 0
  %635 = vmatpush2.bf16.msra.mxu0 0
  %636 = vmatprep.mubr.bf16.mxu0 0
  %637 = vmatmul.mubr.bf16.gmra.mxu0 %v469
  %v638 = vpop.f32.mrf.mxu0
  %v639 = vadd.f32 0.0, %v638
  %v640 = vpop.f32.mrf.mxu0
  %v641 = vpop.f32.mrf.mxu0
  %v642 = vadd.f32 0.0, %v641
  %v643 = vpop.f32.mrf.mxu0
  %644 = vmatprep.mubr.bf16.mxu0 0
  %645 = vmatmul.mubr.bf16.gmra.mxu0 %v470
  %v646 = vpop.f32.mrf.mxu0
  %v647 = vpop.f32.mrf.mxu0
  %v648 = vpop.f32.mrf.mxu0
  %v649 = vadd.f32 0.0, %v648
  %v650 = vpop.f32.mrf.mxu0
  %651 = vmatprep.mubr.bf16.mxu0 0
  %652 = vmatmul.mubr.bf16.gmra.mxu0 %v471
  %v653 = vpop.f32.mrf.mxu0
  %v654 = vadd.f32 0.0, %v653
  %v655 = vpop.f32.mrf.mxu0
  %v656 = vpop.f32.mrf.mxu0
  %v657 = vpop.f32.mrf.mxu0
  %658 = vdwg.mxu0
  %v675 = vunpack.c.l.b16 %v523
  %v676 = vunpack.c.l.b16 %v524
  %v677 = vunpack.c.l.b16 %v525
  %v678 = vunpack.c.l.b16 %v526
  %v679 = vunpack.c.l.b16 %v527
  %v680 = vunpack.c.l.b16 %v528
  %v681 = vunpack.c.l.b16 %v529
  %v682 = vunpack.c.l.b16 %v530
  %v683 = vunpack.c.l.b16 %v531
  %v684 = vunpack.c.l.b16 %v532
  %v685 = vunpack.c.l.b16 %v533
  %v686 = vunpack.c.l.b16 %v534
  %v687 = vunpack.c.l.b16 %v535
  %v688 = vunpack.c.l.b16 %v536
  %v689 = vunpack.c.l.b16 %v537
  %v690 = vunpack.c.l.b16 %v538
  %v691 = vpack.c.b16 %v676, %v675
  %v692 = vpack.c.b16 %v678, %v677
  %v693 = vpack.c.b16 %v680, %v679
  %v694 = vpack.c.b16 %v682, %v681
  %v695 = vpack.c.b16 %v684, %v683
  %v696 = vpack.c.b16 %v686, %v685
  %v697 = vpack.c.b16 %v688, %v687
  %v698 = vpack.c.b16 %v690, %v689
  %707 = vmatprep.subr.bf16.mxu0 0
  %708 = vmatpush1.bf16.msra.mxu0 %v698
  %709 = vmatprep.subr.bf16.mxu0 0
  %710 = vmatpush1.bf16.msra.mxu0 %v697
  %711 = vmatprep.subr.bf16.mxu0 0
  %712 = vmatpush1.bf16.msra.mxu0 %v696
  %713 = vmatprep.subr.bf16.mxu0 0
  %714 = vmatpush1.bf16.msra.mxu0 %v695
  %715 = vmatprep.subr.bf16.mxu0 0
  %716 = vmatpush1.bf16.msra.mxu0 %v694
  %717 = vmatprep.subr.bf16.mxu0 0
  %718 = vmatpush1.bf16.msra.mxu0 %v693
  %719 = vmatprep.subr.bf16.mxu0 0
  %720 = vmatpush1.bf16.msra.mxu0 %v692
  %721 = vmatprep.subr.bf16.mxu0 0
  %722 = vmatpush1.bf16.msra.mxu0 %v691
  %723 = vmatprep.subr.bf16.mxu0 0
  %724 = vmatpush2.bf16.msra.mxu0 0
  %725 = vmatprep.subr.bf16.mxu0 0
  %726 = vmatpush2.bf16.msra.mxu0 0
  %727 = vmatprep.subr.bf16.mxu0 0
  %728 = vmatpush2.bf16.msra.mxu0 0
  %729 = vmatprep.subr.bf16.mxu0 0
  %730 = vmatpush2.bf16.msra.mxu0 0
  %731 = vmatprep.subr.bf16.mxu0 0
  %732 = vmatpush2.bf16.msra.mxu0 0
  %733 = vmatprep.subr.bf16.mxu0 0
  %734 = vmatpush2.bf16.msra.mxu0 0
  %735 = vmatprep.subr.bf16.mxu0 0
  %736 = vmatpush2.bf16.msra.mxu0 0
  %737 = vmatprep.subr.bf16.mxu0 0
  %738 = vmatpush2.bf16.msra.mxu0 0
  %739 = vmatprep.mubr.bf16.mxu0 0
  %740 = vmatmul.mubr.bf16.gmra.mxu0 %v497
  %v741 = vpop.f32.mrf.mxu0
  %v742 = vadd.f32 %v639, %v741
  %v743 = vpop.f32.mrf.mxu0
  %v744 = vpop.f32.mrf.mxu0
  %v745 = vadd.f32 %v642, %v744
  %v746 = vpop.f32.mrf.mxu0
  %747 = vmatprep.mubr.bf16.mxu0 0
  %748 = vmatmul.mubr.bf16.gmra.mxu0 %v498
  %v749 = vpop.f32.mrf.mxu0
  %v750 = vpop.f32.mrf.mxu0
  %v751 = vpop.f32.mrf.mxu0
  %v752 = vadd.f32 %v649, %v751
  %v753 = vpop.f32.mrf.mxu0
  %754 = vmatprep.mubr.bf16.mxu0 0
  %755 = vmatmul.mubr.bf16.gmra.mxu0 %v499
  %v756 = vpop.f32.mrf.mxu0
  %v757 = vadd.f32 %v654, %v756
  %v758 = vpop.f32.mrf.mxu0
  %v759 = vpop.f32.mrf.mxu0
  %v760 = vpop.f32.mrf.mxu0
  %761 = vdwg.mxu0
  %s762 = scalar_lea.vmem %s3, 128
  %v763 = vld [vmem:[%s762] sm:$0xf]
  %v764 = vld [vmem:[%s762 + $0x4] sm:$0xf]
  %v765 = vld [vmem:[%s762 + $0x8] sm:$0xf]
  %v766 = vld [vmem:[%s762 + $0xc] sm:$0xf]
  %v767 = vld [vmem:[%s762 + $0x10] sm:$0xf]
  %v768 = vld [vmem:[%s762 + $0x14] sm:$0xf]
  %v769 = vld [vmem:[%s762 + $0x18] sm:$0xf]
  %v770 = vld [vmem:[%s762 + $0x1c] sm:$0xf]
  %v771 = vld [vmem:[%s762 + $0x20] sm:$0xf]
  %v772 = vld [vmem:[%s762 + $0x24] sm:$0xf]
  %v773 = vld [vmem:[%s762 + $0x28] sm:$0xf]
  %v774 = vld [vmem:[%s762 + $0x2c] sm:$0xf]
  %v775 = vld [vmem:[%s762 + $0x30] sm:$0xf]
  %v776 = vld [vmem:[%s762 + $0x34] sm:$0xf]
  %v777 = vld [vmem:[%s762 + $0x38] sm:$0xf]
  %v778 = vld [vmem:[%s762 + $0x3c] sm:$0xf]
  %v795 = vunpack.c.l.b16 %v763
  %v796 = vunpack.c.l.b16 %v764
  %v797 = vunpack.c.l.b16 %v765
  %v798 = vunpack.c.l.b16 %v766
  %v799 = vunpack.c.l.b16 %v767
  %v800 = vunpack.c.l.b16 %v768
  %v801 = vunpack.c.l.b16 %v769
  %v802 = vunpack.c.l.b16 %v770
  %v803 = vunpack.c.l.b16 %v771
  %v804 = vunpack.c.l.b16 %v772
  %v805 = vunpack.c.l.b16 %v773
  %v806 = vunpack.c.l.b16 %v774
  %v807 = vunpack.c.l.b16 %v775
  %v808 = vunpack.c.l.b16 %v776
  %v809 = vunpack.c.l.b16 %v777
  %v810 = vunpack.c.l.b16 %v778
  %v811 = vpack.c.b16 %v796, %v795
  %v812 = vpack.c.b16 %v798, %v797
  %v813 = vpack.c.b16 %v800, %v799
  %v814 = vpack.c.b16 %v802, %v801
  %v815 = vpack.c.b16 %v804, %v803
  %v816 = vpack.c.b16 %v806, %v805
  %v817 = vpack.c.b16 %v808, %v807
  %v818 = vpack.c.b16 %v810, %v809
  %827 = vmatprep.subr.bf16.mxu0 0
  %828 = vmatpush1.bf16.msra.mxu0 %v818
  %829 = vmatprep.subr.bf16.mxu0 0
  %830 = vmatpush1.bf16.msra.mxu0 %v817
  %831 = vmatprep.subr.bf16.mxu0 0
  %832 = vmatpush1.bf16.msra.mxu0 %v816
  %833 = vmatprep.subr.bf16.mxu0 0
  %834 = vmatpush1.bf16.msra.mxu0 %v815
  %835 = vmatprep.subr.bf16.mxu0 0
  %836 = vmatpush1.bf16.msra.mxu0 %v814
  %837 = vmatprep.subr.bf16.mxu0 0
  %838 = vmatpush1.bf16.msra.mxu0 %v813
  %839 = vmatprep.subr.bf16.mxu0 0
  %840 = vmatpush1.bf16.msra.mxu0 %v812
  %841 = vmatprep.subr.bf16.mxu0 0
  %842 = vmatpush1.bf16.msra.mxu0 %v811
  %843 = vmatprep.subr.bf16.mxu0 0
  %844 = vmatpush2.bf16.msra.mxu0 0
  %845 = vmatprep.subr.bf16.mxu0 0
  %846 = vmatpush2.bf16.msra.mxu0 0
  %847 = vmatprep.subr.bf16.mxu0 0
  %848 = vmatpush2.bf16.msra.mxu0 0
  %849 = vmatprep.subr.bf16.mxu0 0
  %850 = vmatpush2.bf16.msra.mxu0 0
  %851 = vmatprep.subr.bf16.mxu0 0
  %852 = vmatpush2.bf16.msra.mxu0 0
  %853 = vmatprep.subr.bf16.mxu0 0
  %854 = vmatpush2.bf16.msra.mxu0 0
  %855 = vmatprep.subr.bf16.mxu0 0
  %856 = vmatpush2.bf16.msra.mxu0 0
  %857 = vmatprep.subr.bf16.mxu0 0
  %858 = vmatpush2.bf16.msra.mxu0 0
  %859 = vmatprep.mubr.bf16.mxu0 0
  %860 = vmatmul.mubr.bf16.gmra.mxu0 %v520
  %v861 = vpop.f32.mrf.mxu0
  %v862 = vadd.f32 0.0, %v861
  %v863 = vpop.f32.mrf.mxu0
  %v864 = vpop.f32.mrf.mxu0
  %v865 = vadd.f32 0.0, %v864
  %v866 = vpop.f32.mrf.mxu0
  %867 = vmatprep.mubr.bf16.mxu0 0
  %868 = vmatmul.mubr.bf16.gmra.mxu0 %v521
  %v869 = vpop.f32.mrf.mxu0
  %v870 = vpop.f32.mrf.mxu0
  %v871 = vpop.f32.mrf.mxu0
  %v872 = vadd.f32 0.0, %v871
  %v873 = vpop.f32.mrf.mxu0
  %874 = vmatprep.mubr.bf16.mxu0 0
  %875 = vmatmul.mubr.bf16.gmra.mxu0 %v522
  %v876 = vpop.f32.mrf.mxu0
  %v877 = vadd.f32 0.0, %v876
  %v878 = vpop.f32.mrf.mxu0
  %v879 = vpop.f32.mrf.mxu0
  %v880 = vpop.f32.mrf.mxu0
  %881 = vdwg.mxu0
  %v882 = vadd.f32 %v742, %v862
  %v883 = vadd.f32 %v745, %v865
  %v884 = vadd.f32 %v752, %v872
  %v885 = vadd.f32 %v757, %v877
  %v886 = vld [vmem:[%s4] sm:$0x1]
  %v888 = vlaneseq
  %v889 = vshrl.u32 %v888, 7
  %v890 = vsub.s32 0, %v889
  %v891 = vrot.slane %v886, %v890
  %v893 = vadd.f32 %v882, %v891
  %v894 = vadd.f32 %v883, %v891
  %v895 = vadd.f32 %v884, %v891
  %v896 = vadd.f32 %v885, %v891
  %v897 = vmul.f32 %v893, 0.5
  %v898 = vmul.f32 %v894, 0.5
  %v899 = vmul.f32 %v895, 0.5
  %v900 = vmul.f32 %v896, 0.5
  %v901 = vmul.f32 %v893, 0.70710677
  %v902 = vmul.f32 %v894, 0.70710677
  %v903 = vmul.f32 %v895, 0.70710677
  %v904 = vmul.f32 %v896, 0.70710677
  %v905 = verf.f32.pop %v901
  %v906 = verf.f32.pop %v902
  %v907 = verf.f32.pop %v903
  %v908 = verf.f32.pop %v904
  %v909 = vadd.f32 %v905, 1.0
  %v910 = vadd.f32 %v906, 1.0
  %v911 = vadd.f32 %v907, 1.0
  %v912 = vadd.f32 %v908, 1.0
  %v913 = vmul.f32 %v897, %v909
  %v914 = vmul.f32 %v898, %v910
  %v915 = vmul.f32 %v899, %v911
  %v916 = vmul.f32 %v900, %v912
  %919 = vrot.lane.b32.xlu0 %v913, 64
  %v920 = vpop.permute.xlu0 %919
  %921 = vrot.lane.b32.xlu0 %v914, 64
  %v922 = vpop.permute.xlu0 %921
  %v925 = vmax.f32 %v913, %v920
  %v926 = vmax.f32 %v914, %v922
  %v929 = vcombine.high %v925, %v925
  %v931 = vunpack.c.l.s4 1983009808
  %v932 = vunpack.c.0.s8 %v931
  %v933 = vlaneseq
  %v934 = vshrl.u32 %v933, 7
  %v935 = vsub.s32 %v932, %v934
  %v936 = vrot.slane %v925, %v935
  %v938 = vunpack.c.l.s4 1983009808
  %v939 = vunpack.c.0.s8 %v938
  %v940 = vlaneseq
  %v941 = vshrl.u32 %v940, 7
  %v942 = vsub.s32 %v939, %v941
  %v943 = vrot.slane %v929, %v942
  %v944 = vcombine.high %v936, %v936
  %v945 = vcombine.high %v943, %v943
  %v946 = vcombine.high %v926, %v926
  %v948 = vunpack.c.l.s4 1983009808
  %v949 = vunpack.c.0.s8 %v948
  %v950 = vlaneseq
  %v951 = vshrl.u32 %v950, 7
  %v952 = vsub.s32 %v949, %v951
  %v953 = vrot.slane %v926, %v952
  %v955 = vunpack.c.l.s4 1983009808
  %v956 = vunpack.c.0.s8 %v955
  %v957 = vlaneseq
  %v958 = vshrl.u32 %v957, 7
  %v959 = vsub.s32 %v956, %v958
  %v960 = vrot.slane %v946, %v959
  %v961 = vcombine.high %v953, %v953
  %v962 = vcombine.high %v960, %v960
  %vm971 = vcmask 517120
  %v972 = vsel %vm971, %v936, -inf
  %v973 = vrot.slane %v972, 4
  %v974 = vmax.f32 %v972, %v973
  %v975 = vrot.slane %v974, 2
  %v976 = vmax.f32 %v974, %v975
  %v977 = vrot.slane %v976, 1
  %v978 = vmax.f32 %v976, %v977
  %v979 = vsel %vm971, %v944, -inf
  %v980 = vrot.slane %v979, 4
  %v981 = vmax.f32 %v979, %v980
  %v982 = vrot.slane %v981, 2
  %v983 = vmax.f32 %v981, %v982
  %v984 = vrot.slane %v983, 1
  %v985 = vmax.f32 %v983, %v984
  %v986 = vsel %vm971, %v943, -inf
  %v987 = vrot.slane %v986, 4
  %v988 = vmax.f32 %v986, %v987
  %v989 = vrot.slane %v988, 2
  %v990 = vmax.f32 %v988, %v989
  %v991 = vrot.slane %v990, 1
  %v992 = vmax.f32 %v990, %v991
  %v993 = vsel %vm971, %v945, -inf
  %v994 = vrot.slane %v993, 4
  %v995 = vmax.f32 %v993, %v994
  %v996 = vrot.slane %v995, 2
  %v997 = vmax.f32 %v995, %v996
  %v998 = vrot.slane %v997, 1
  %v999 = vmax.f32 %v997, %v998
  %v1000 = vsel %vm971, %v953, -inf
  %v1001 = vrot.slane %v1000, 4
  %v1002 = vmax.f32 %v1000, %v1001
  %v1003 = vrot.slane %v1002, 2
  %v1004 = vmax.f32 %v1002, %v1003
  %v1005 = vrot.slane %v1004, 1
  %v1006 = vmax.f32 %v1004, %v1005
  %v1007 = vsel %vm971, %v961, -inf
  %v1008 = vrot.slane %v1007, 4
  %v1009 = vmax.f32 %v1007, %v1008
  %v1010 = vrot.slane %v1009, 2
  %v1011 = vmax.f32 %v1009, %v1010
  %v1012 = vrot.slane %v1011, 1
  %v1013 = vmax.f32 %v1011, %v1012
  %v1014 = vsel %vm971, %v960, -inf
  %v1015 = vrot.slane %v1014, 4
  %v1016 = vmax.f32 %v1014, %v1015
  %v1017 = vrot.slane %v1016, 2
  %v1018 = vmax.f32 %v1016, %v1017
  %v1019 = vrot.slane %v1018, 1
  %v1020 = vmax.f32 %v1018, %v1019
  %v1021 = vsel %vm971, %v962, -inf
  %v1022 = vrot.slane %v1021, 4
  %v1023 = vmax.f32 %v1021, %v1022
  %v1024 = vrot.slane %v1023, 2
  %v1025 = vmax.f32 %v1023, %v1024
  %v1026 = vrot.slane %v1025, 1
  %v1027 = vmax.f32 %v1025, %v1026
  %1030 = vrot.lane.b32.xlu0 %v915, 64
  %v1031 = vpop.permute.xlu0 %1030
  %1032 = vrot.lane.b32.xlu0 %v916, 64
  %v1033 = vpop.permute.xlu0 %1032
  %v1036 = vmax.f32 %v915, %v1031
  %v1037 = vmax.f32 %v916, %v1033
  %v1040 = vcombine.high %v1036, %v1036
  %v1042 = vunpack.c.l.s4 1983009808
  %v1043 = vunpack.c.0.s8 %v1042
  %v1044 = vlaneseq
  %v1045 = vshrl.u32 %v1044, 7
  %v1046 = vsub.s32 %v1043, %v1045
  %v1047 = vrot.slane %v1036, %v1046
  %v1049 = vunpack.c.l.s4 1983009808
  %v1050 = vunpack.c.0.s8 %v1049
  %v1051 = vlaneseq
  %v1052 = vshrl.u32 %v1051, 7
  %v1053 = vsub.s32 %v1050, %v1052
  %v1054 = vrot.slane %v1040, %v1053
  %v1055 = vcombine.high %v1047, %v1047
  %v1056 = vcombine.high %v1054, %v1054
  %v1057 = vcombine.high %v1037, %v1037
  %v1059 = vunpack.c.l.s4 1983009808
  %v1060 = vunpack.c.0.s8 %v1059
  %v1061 = vlaneseq
  %v1062 = vshrl.u32 %v1061, 7
  %v1063 = vsub.s32 %v1060, %v1062
  %v1064 = vrot.slane %v1037, %v1063
  %v1066 = vunpack.c.l.s4 1983009808
  %v1067 = vunpack.c.0.s8 %v1066
  %v1068 = vlaneseq
  %v1069 = vshrl.u32 %v1068, 7
  %v1070 = vsub.s32 %v1067, %v1069
  %v1071 = vrot.slane %v1057, %v1070
  %v1072 = vcombine.high %v1064, %v1064
  %v1073 = vcombine.high %v1071, %v1071
  %v1082 = vsel %vm971, %v1047, -inf
  %v1083 = vrot.slane %v1082, 4
  %v1084 = vmax.f32 %v1082, %v1083
  %v1085 = vrot.slane %v1084, 2
  %v1086 = vmax.f32 %v1084, %v1085
  %v1087 = vrot.slane %v1086, 1
  %v1088 = vmax.f32 %v1086, %v1087
  %v1089 = vsel %vm971, %v1055, -inf
  %v1090 = vrot.slane %v1089, 4
  %v1091 = vmax.f32 %v1089, %v1090
  %v1092 = vrot.slane %v1091, 2
  %v1093 = vmax.f32 %v1091, %v1092
  %v1094 = vrot.slane %v1093, 1
  %v1095 = vmax.f32 %v1093, %v1094
  %v1096 = vsel %vm971, %v1054, -inf
  %v1097 = vrot.slane %v1096, 4
  %v1098 = vmax.f32 %v1096, %v1097
  %v1099 = vrot.slane %v1098, 2
  %v1100 = vmax.f32 %v1098, %v1099
  %v1101 = vrot.slane %v1100, 1
  %v1102 = vmax.f32 %v1100, %v1101
  %v1103 = vsel %vm971, %v1056, -inf
  %v1104 = vrot.slane %v1103, 4
  %v1105 = vmax.f32 %v1103, %v1104
  %v1106 = vrot.slane %v1105, 2
  %v1107 = vmax.f32 %v1105, %v1106
  %v1108 = vrot.slane %v1107, 1
  %v1109 = vmax.f32 %v1107, %v1108
  %v1110 = vsel %vm971, %v1064, -inf
  %v1111 = vrot.slane %v1110, 4
  %v1112 = vmax.f32 %v1110, %v1111
  %v1113 = vrot.slane %v1112, 2
  %v1114 = vmax.f32 %v1112, %v1113
  %v1115 = vrot.slane %v1114, 1
  %v1116 = vmax.f32 %v1114, %v1115
  %v1117 = vsel %vm971, %v1072, -inf
  %v1118 = vrot.slane %v1117, 4
  %v1119 = vmax.f32 %v1117, %v1118
  %v1120 = vrot.slane %v1119, 2
  %v1121 = vmax.f32 %v1119, %v1120
  %v1122 = vrot.slane %v1121, 1
  %v1123 = vmax.f32 %v1121, %v1122
  %v1124 = vsel %vm971, %v1071, -inf
  %v1125 = vrot.slane %v1124, 4
  %v1126 = vmax.f32 %v1124, %v1125
  %v1127 = vrot.slane %v1126, 2
  %v1128 = vmax.f32 %v1126, %v1127
  %v1129 = vrot.slane %v1128, 1
  %v1130 = vmax.f32 %v1128, %v1129
  %v1131 = vsel %vm971, %v1073, -inf
  %v1132 = vrot.slane %v1131, 4
  %v1133 = vmax.f32 %v1131, %v1132
  %v1134 = vrot.slane %v1133, 2
  %v1135 = vmax.f32 %v1133, %v1134
  %v1136 = vrot.slane %v1135, 1
  %v1137 = vmax.f32 %v1135, %v1136
  %vm1146 = vcmask 1041409
  %v1147 = vsel %vm1146, %v985, %v978
  %vm1148 = vcmask 1042434
  %v1149 = vsel %vm1148, %v992, %v1147
  %vm1150 = vcmask 1043459
  %v1151 = vsel %vm1150, %v999, %v1149
  %vm1152 = vcmask 1044484
  %v1153 = vsel %vm1152, %v1006, %v1151
  %vm1154 = vcmask 1045509
  %v1155 = vsel %vm1154, %v1013, %v1153
  %vm1156 = vcmask 1046534
  %v1157 = vsel %vm1156, %v1020, %v1155
  %vm1158 = vcmask 1047559
  %v1159 = vsel %vm1158, %v1027, %v1157
  %v1169 = vsel %vm1146, %v1095, %v1088
  %v1170 = vsel %vm1148, %v1102, %v1169
  %v1171 = vsel %vm1150, %v1109, %v1170
  %v1172 = vsel %vm1152, %v1116, %v1171
  %v1173 = vsel %vm1154, %v1123, %v1172
  %v1174 = vsel %vm1156, %v1130, %v1173
  %v1175 = vsel %vm1158, %v1137, %v1174
  %1176 = vrot.lane.b32.xlu0 %v1175, 64
  %v1177 = vpop.permute.xlu0 %1176
  %v1179 = vsel %vm111, %v1159, %v1177
  %1180 = vst [vmem:[%s6] sm:$0xff] %v1179
  // Predicated region
  $region26: #{conv_block_forward.1} parent=0 // pred_check
    _
  $region27: #{conv_block_forward.1} parent=0 // pred_check_branch
    %1182 = sbr.rel (0) target = $region29
  $region28: #{conv_block_forward.1} parent=0 // pred_region
    _
  $region29: #{conv_block_forward.1} parent=0 // pred_fallthru
    _
  // Predicated region
  $region30: #{conv_block_forward.1} parent=0 // pred_check
    _
  $region31: #{conv_block_forward.1} parent=0 // pred_check_branch
    %1184 = sbr.rel (0) target = $region33
  $region32: #{conv_block_forward.1} parent=0 // pred_region
    _
  $region33: #{conv_block_forward.1} parent=0 // pred_fallthru
    _

</llo_original>
